<compile_context>
chip_gen: v6e
topology: v6e:2x2x1
jax: 0.10.0
libtpu: 0.0.40
codegen_flags: <defaults>
</compile_context>

<pallas_src>
import functools

import jax
import jax.numpy as jnp
from jax import lax
from jax.experimental import pallas as pl
from jax.experimental.pallas import tpu as pltpu

NUM_CLASSES = 12     # fixed by the hard-coded 12x12 adjacency in forward()
IN_CHANNELS = 32     # small synthetic feature width
LEAKY_SLOPE = 0.2
THRED = 0.1
NEG_INF = -1e30
MASK_BIG = 1e30
GROUP = 4            # graphs fused per attention super-block: GROUP*12 = 48 rows
                     # (multiple of 8 sublanes -> tile-aligned reshapes).

# Hard-coded AU adjacency from the PyTorch forward().
ADJ_BASE = jnp.array(
    [[0, 0, 0, 1, 0, 1, 1, 1, 1, 1, 1, 1],
     [0, 0, 0, 1, 0, 1, 1, 1, 1, 1, 1, 1],
     [0, 0, 0, 1, 0, 1, 1, 1, 1, 1, 1, 1],
     [1, 1, 1, 0, 1, 1, 1, 1, 1, 1, 1, 1],
     [0, 0, 0, 1, 0, 1, 1, 1, 1, 1, 1, 1],
     [1, 1, 1, 1, 1, 0, 1, 1, 1, 0, 0, 0],
     [1, 1, 1, 1, 1, 1, 0, 0, 0, 1, 1, 1],
     [1, 1, 1, 1, 1, 1, 0, 0, 0, 1, 1, 1],
     [1, 1, 1, 1, 1, 1, 0, 0, 0, 1, 1, 1],
     [1, 1, 1, 1, 1, 0, 1, 1, 1, 0, 0, 0],
     [1, 1, 1, 1, 1, 0, 1, 1, 1, 0, 0, 0],
     [1, 1, 1, 1, 1, 0, 1, 1, 1, 0, 0, 0]],
    dtype=jnp.float32)


def _gat_block_kernel(bias_ref, x_ref, wext_ref, out_ref, *, tb, n, c, group,
                      mm_dtype):
    """One block of `tb` batch elements per grid step.

    bias_ref: (tb//group, group*n, group*n) bf16 additive mask (0 or -1e30)
    x_ref   : (tb*n, c)  mm_dtype flattened node features
    wext_ref: (c, c+2)   mm_dtype [W | W a_l | W a_r^T]
    out_ref : (tb*n, c)  f32
    """
    ng = group * n
    pairs = tb // group

    xb = x_ref[...]                                               # (tb*n, c)

    # Fused projection + attention matvecs: one MXU matmul with M = tb*n rows.
    h_ext = jnp.dot(xb, wext_ref[...],
                    preferred_element_type=jnp.float32)            # (tb*n, c+2) f32
    h_ext = h_ext.reshape(pairs, ng, c + 2)                        # 8-aligned split

    h = h_ext[:, :, :c]                                            # (pairs, ng, c)
    sc = h_ext[:, :, c:c + 2]                                      # lanes [el, er]

    # e[p,i,j] = el[p,i] + er[p,j] via a rank-2 flash-style batched matmul
    # (avoids any sublane<->lane transpose).
    lane = lax.broadcasted_iota(jnp.int32, sc.shape, 2)
    qa = jnp.where(lane == 0, sc, 1.0)                             # [el, 1]
    ka = jnp.where(lane == 0, 1.0, sc)                             # [1, er]
    e = jnp.einsum('bid,bjd->bij', qa, ka,
                   preferred_element_type=jnp.float32)             # (pairs, ng, ng)

    e = jnp.where(e > 0, e, LEAKY_SLOPE * e)                       # LeakyReLU(0.2)
    e = e + bias_ref[...].astype(jnp.float32)                      # additive mask

    m = jnp.max(e, axis=-1, keepdims=True)
    p = jnp.exp(e - m)                                             # f32
    l = jnp.sum(p, axis=-1, keepdims=True)                         # (pairs, ng, 1)
    inv_l = pl.reciprocal(l, approx=True)                          # EUP, ~free

    agg = jnp.einsum('bij,bjc->bic', p.astype(mm_dtype), h.astype(mm_dtype),
                     preferred_element_type=jnp.float32)           # (pairs, ng, c)
    agg = agg * inv_l

    out_ref[...] = (agg.reshape(tb * n, c)
                    + xb.astype(jnp.float32)).astype(out_ref.dtype)


def cross_region_relationship_modeling(x, adj_mask, w, a_l, a_r, *,
                                       block_b=None, group=GROUP,
                                       matmul_dtype=jnp.bfloat16):
    """x: [B, N, C], adj_mask: [B, N, N].  Returns float32 [B, N, C]."""
    B, N, C = x.shape
    assert N == NUM_CLASSES
    f32 = jnp.float32
    mm_dtype = jnp.dtype(matmul_dtype)
    g = int(group)

    # Fold the attention vectors into the projection: [W | W a_l | W a_r^T].
    w = w.astype(f32)
    a_l = a_l.astype(f32)
    a_r = a_r.astype(f32)
    w_ext = jnp.concatenate([w, w @ a_l, w @ a_r.T], axis=1).astype(mm_dtype)

    # Auto-scaled batch block: big enough to amortize per-step overhead
    # (~1 MB HBM per step at tb=256), capped at B//2 (rounded to GROUP) so the
    # grid has >=2 steps for v7x's two TensorCores whenever the batch permits.
    cap = 256 if block_b is None else int(block_b)
    cap = max(g, (cap // g) * g)
    tb = min(cap, pl.cdiv(B, g) * g)
    if B >= 2 * g:
        tb = min(tb, (B // (2 * g)) * g)
    tb = max(tb, g)
    Bp = pl.cdiv(B, tb) * tb

    if Bp != B:
        pad = Bp - B
        x = jnp.pad(x, ((0, pad), (0, 0), (0, 0)))
        adj_mask = jnp.pad(adj_mask, ((0, pad), (0, 0), (0, 0)))

    # Hoisted adjacency as an additive bias (0 where edge kept, -1e30 otherwise),
    # block-diagonal so each super-graph of group*N rows holds `group`
    # independent 12-node graphs.  bf16 keeps the f32 exponent range and halves
    # the mask HBM bytes.  (Padded batch rows keep the identity edge, so no
    # softmax row is ever fully masked.)
    eye = jnp.eye(N, dtype=f32)
    edge = ((ADJ_BASE[None] * adj_mask.astype(f32) + eye) > THRED).astype(f32)
    ng = g * N
    eye_g = jnp.eye(g, dtype=f32)
    blk = edge.reshape(Bp // g, g, 1, N, N) * eye_g.reshape(1, g, g, 1, 1)
    blk = blk.transpose(0, 1, 3, 2, 4).reshape(Bp // g, ng, ng)
    bias = ((blk - 1.0) * jnp.float32(MASK_BIG)).astype(jnp.bfloat16)

    x_flat = x.astype(mm_dtype).reshape(Bp * N, C)   # free, row-major
    grid = (Bp // tb,)

    kernel = functools.partial(_gat_block_kernel, tb=tb, n=N, c=C, group=g,
                               mm_dtype=mm_dtype)

    mm_bytes = mm_dtype.itemsize
    cost = pl.CostEstimate(
        flops=int(2 * Bp * N * C * (C + 2)
                  + 2 * (Bp // g) * ng * ng * 2
                  + 2 * (Bp // g) * ng * ng * C),
        transcendentals=int((Bp // g) * ng * ng),
        bytes_accessed=int(Bp * N * C * mm_bytes        # x in
                           + 4 * Bp * N * C             # out (f32)
                           + 2 * (Bp // g) * ng * ng    # bias (bf16)
                           + C * (C + 2) * mm_bytes),   # W_ext
    )

    out_flat = pl.pallas_call(
        kernel,
        out_shape=jax.ShapeDtypeStruct((Bp * N, C), f32),
        grid_spec=pltpu.PrefetchScalarGridSpec(
            num_scalar_prefetch=0,
            grid=grid,
            in_specs=[
                pl.BlockSpec((tb // g, ng, ng), lambda b: (b, 0, 0)),  # bias
                pl.BlockSpec((tb * N, C), lambda b: (b, 0)),           # x (flat)
                pl.BlockSpec((C, C + 2), lambda b: (0, 0)),            # W_ext
            ],
            out_specs=pl.BlockSpec((tb * N, C), lambda b: (b, 0)),
        ),
        compiler_params=pltpu.CompilerParams(
            dimension_semantics=("parallel",),
            vmem_limit_bytes=48 * 1024 * 1024),
        cost_estimate=cost,
    )(bias, x_flat, w_ext)

    return out_flat.reshape(Bp, N, C)[:B]


def _reference(x, adj_mask, w, a_l, a_r):
    """Pure-JAX (f32) reference for correctness checking."""
    eye = jnp.eye(NUM_CLASSES, dtype=jnp.float32)
    adj = ADJ_BASE[None] * adj_mask + eye                       # (B, N, N)
    h = jnp.einsum('bnc,cd->bnd', x, w)                         # (B, N, C)
    el = jnp.einsum('bnc,c->bn', h, a_l[:, 0])[:, :, None]      # (B, N, 1)
    er = jnp.einsum('bnc,c->bn', h, a_r[0, :])[:, None, :]      # (B, 1, N)
    e = el + er
    e = jnp.where(e > 0, e, LEAKY_SLOPE * e)
    e = jnp.where(adj > THRED, e, NEG_INF)
    attn = jax.nn.softmax(e, axis=-1)
    return jnp.einsum('bnm,bmc->bnc', attn, h) + x


if __name__ == "__main__":
    key = jax.random.PRNGKey(0)
    k_x, k_mask, k_w, k_al, k_ar, k_x2, k_m2 = jax.random.split(key, 7)

    N, C = NUM_CLASSES, IN_CHANNELS
    w = jax.random.normal(k_w, (C, C), jnp.float32) * (1.0 / jnp.sqrt(C))
    a_l = jax.random.normal(k_al, (C, 1), jnp.float32) * (1.0 / jnp.sqrt(C))
    a_r = jax.random.normal(k_ar, (1, C), jnp.float32) * (1.0 / jnp.sqrt(C))

    # Small case matching the module usage (batch=2): single grid step.
    B = 2
    x = jax.random.normal(k_x, (B, N, C), dtype=jnp.float32)
    adj_mask = (jax.random.uniform(k_mask, (B, N, N)) > 0.3).astype(jnp.float32)
    ref = _reference(x, adj_mask, w, a_l, a_r)

    # f32 MXU path: tight check of the kernel structure.
    out_f32 = jax.block_until_ready(
        cross_region_relationship_modeling(x, adj_mask, w, a_l, a_r,
                                           matmul_dtype=jnp.float32))
    assert out_f32.shape == (B, N, C)
    assert jnp.allclose(out_f32, ref, rtol=5e-3, atol=5e-3), "mismatch f32 (B=2)"

    # Default perf path (bf16 MXU operands, f32 accumulation): looser check.
    out_bf = jax.block_until_ready(
        cross_region_relationship_modeling(x, adj_mask, w, a_l, a_r))
    assert out_bf.shape == (B, N, C)
    assert jnp.allclose(out_bf, ref, rtol=5e-2, atol=1e-1), "mismatch bf16 (B=2)"
    assert float(jnp.mean(jnp.abs(out_bf - ref))) < 3e-2, "bf16 mean err (B=2)"

    # Larger odd batch: padding + auto block scaling + multi-step grid.
    B2 = 37
    x2 = jax.random.normal(k_x2, (B2, N, C), dtype=jnp.float32)
    adj_mask2 = (jax.random.uniform(k_m2, (B2, N, N)) > 0.3).astype(jnp.float32)
    ref2 = _reference(x2, adj_mask2, w, a_l, a_r)
    out2 = jax.block_until_ready(
        cross_region_relationship_modeling(x2, adj_mask2, w, a_l, a_r))
    assert out2.shape == (B2, N, C)
    assert jnp.allclose(out2, ref2, rtol=5e-2, atol=1e-1), "mismatch bf16 (B=37)"
    assert float(jnp.mean(jnp.abs(out2 - ref2))) < 3e-2, "bf16 mean err (B=37)"

    print("KERNEL_OK")
</pallas_src>

<mosaic_0001>
module attributes {stable_mosaic.version = 11 : i64} {
  func.func @_gat_block_kernel(%arg0: i32, %arg1: memref<1x48x48xbf16, #tpu.memory_space<vmem>>, %arg2: memref<48x32xf32, #tpu.memory_space<vmem>>, %arg3: memref<32x34xf32, #tpu.memory_space<vmem>>, %arg4: memref<48x32xf32, #tpu.memory_space<vmem>>) attributes {dimension_semantics = [#tpu.dimension_semantics<parallel>], iteration_bounds = array<i64: 1>, scalar_prefetch = 0 : i64, scratch_operands = 0 : i64, tpu.core_type = #tpu.core_type<tc>, window_params = [{transform_indices = @transform_0, window_bounds = array<i64: 1, 48, 48>}, {transform_indices = @transform_1, window_bounds = array<i64: 48, 32>}, {pipeline_mode = #tpu.pipeline_mode<synchronous>, transform_indices = @transform_2, window_bounds = array<i64: 32, 34>}, {transform_indices = @transform_3, window_bounds = array<i64: 48, 32>}]} {
    %c0 = arith.constant 0 : index
    %c0_0 = arith.constant 0 : index
    %0 = vector.load %arg2[%c0, %c0_0] : memref<48x32xf32, #tpu.memory_space<vmem>>, vector<48x32xf32>
    %c0_1 = arith.constant 0 : index
    %c0_2 = arith.constant 0 : index
    %1 = vector.load %arg3[%c0_1, %c0_2] : memref<32x34xf32, #tpu.memory_space<vmem>>, vector<32x34xf32>
    %cst = arith.constant dense<0.000000e+00> : vector<48x34xf32>
    %2 = tpu.matmul %0, %1, %cst {dimension_numbers = #tpu.dot_dimension_numbers<[1], [0], [0], [1], [0, 0, 1, 1], [], []>} : vector<48x32xf32>, vector<32x34xf32>, vector<48x34xf32> -> vector<48x34xf32>
    %3 = vector.shape_cast %2 : vector<48x34xf32> to vector<1x48x34xf32>
    %4 = vector.extract_strided_slice %3 {offsets = [0, 0, 0], sizes = [1, 48, 32], strides = [1, 1, 1]} : vector<1x48x34xf32> to vector<1x48x32xf32>
    %5 = vector.extract_strided_slice %3 {offsets = [0, 0, 32], sizes = [1, 48, 2], strides = [1, 1, 1]} : vector<1x48x34xf32> to vector<1x48x2xf32>
    %6 = tpu.iota {dimensions = array<i32: 2>} : vector<1x48x2xi32>
    %c0_i32 = arith.constant 0 : i32
    %7 = vector.broadcast %c0_i32 : i32 to vector<1x48x2xi32>
    %8 = arith.cmpi eq, %6, %7 : vector<1x48x2xi32>
    %cst_3 = arith.constant 1.000000e+00 : f32
    %9 = vector.broadcast %cst_3 : f32 to vector<1x48x2xf32>
    %10 = arith.select %8, %5, %9 : vector<1x48x2xi1>, vector<1x48x2xf32>
    %c0_i32_4 = arith.constant 0 : i32
    %11 = vector.broadcast %c0_i32_4 : i32 to vector<1x48x2xi32>
    %12 = arith.cmpi eq, %6, %11 : vector<1x48x2xi32>
    %cst_5 = arith.constant 1.000000e+00 : f32
    %13 = vector.broadcast %cst_5 : f32 to vector<1x48x2xf32>
    %14 = arith.select %12, %13, %5 : vector<1x48x2xi1>, vector<1x48x2xf32>
    "tpu.trace_start"() <{level = 10 : i32, message = "bid,bjd->bij"}> : () -> ()
    %cst_6 = arith.constant dense<0.000000e+00> : vector<1x48x48xf32>
    %15 = tpu.matmul %10, %14, %cst_6 {dimension_numbers = #tpu.dot_dimension_numbers<[2], [2], [1], [1], [0, 0, 0, 1, 1, 1], [0], [0]>} : vector<1x48x2xf32>, vector<1x48x2xf32>, vector<1x48x48xf32> -> vector<1x48x48xf32>
    %cst_7 = arith.constant 0.000000e+00 : f32
    "tpu.trace_stop"() : () -> ()
    %16 = vector.broadcast %cst_7 : f32 to vector<1x48x48xf32>
    %17 = arith.cmpf ogt, %15, %16 : vector<1x48x48xf32>
    %cst_8 = arith.constant 2.000000e-01 : f32
    %18 = vector.broadcast %cst_8 : f32 to vector<1x48x48xf32>
    %19 = arith.mulf %18, %15 : vector<1x48x48xf32>
    %20 = arith.select %17, %15, %19 : vector<1x48x48xi1>, vector<1x48x48xf32>
    %c0_9 = arith.constant 0 : index
    %c0_10 = arith.constant 0 : index
    %c0_11 = arith.constant 0 : index
    %21 = vector.load %arg1[%c0_9, %c0_10, %c0_11] : memref<1x48x48xbf16, #tpu.memory_space<vmem>>, vector<1x48x48xbf16>
    %22 = arith.extf %21 : vector<1x48x48xbf16> to vector<1x48x48xf32>
    %23 = arith.addf %20, %22 : vector<1x48x48xf32>
    %cst_12 = arith.constant dense<0xFF800000> : vector<1x48xf32>
    %24 = vector.multi_reduction <maximumf>, %23, %cst_12 [2] : vector<1x48x48xf32> to vector<1x48xf32>
    %25 = vector.shape_cast %24 : vector<1x48xf32> to vector<1x48x1xf32>
    %26 = vector.broadcast %25 : vector<1x48x1xf32> to vector<1x48x48xf32>
    %27 = arith.subf %23, %26 : vector<1x48x48xf32>
    %28 = math.exp %27 : vector<1x48x48xf32>
    %cst_13 = arith.constant dense<0.000000e+00> : vector<1x48xf32>
    %29 = vector.multi_reduction <add>, %28, %cst_13 [2] : vector<1x48x48xf32> to vector<1x48xf32>
    %30 = vector.shape_cast %29 : vector<1x48xf32> to vector<1x48x1xf32>
    %31 = tpu.reciprocal %30 {approx = true} : vector<1x48x1xf32> -> vector<1x48x1xf32>
    "tpu.trace_start"() <{level = 10 : i32, message = "bij,bjc->bic"}> : () -> ()
    %cst_14 = arith.constant dense<0.000000e+00> : vector<1x48x32xf32>
    %32 = tpu.matmul %28, %4, %cst_14 {dimension_numbers = #tpu.dot_dimension_numbers<[2], [1], [1], [2], [0, 0, 0, 1, 1, 2], [0], [0]>} : vector<1x48x48xf32>, vector<1x48x32xf32>, vector<1x48x32xf32> -> vector<1x48x32xf32>
    "tpu.trace_stop"() : () -> ()
    %33 = vector.broadcast %31 : vector<1x48x1xf32> to vector<1x48x32xf32>
    %34 = arith.mulf %32, %33 : vector<1x48x32xf32>
    %35 = vector.shape_cast %34 : vector<1x48x32xf32> to vector<48x32xf32>
    %36 = arith.addf %35, %0 : vector<48x32xf32>
    %c0_15 = arith.constant 0 : index
    %c0_16 = arith.constant 0 : index
    %37 = vector.load %arg4[%c0_15, %c0_16] : memref<48x32xf32, #tpu.memory_space<vmem>>, vector<48x32xf32>
    tpu.vector_store %arg4[%c0_15, %c0_16], %36 {strides = array<i32>} : memref<48x32xf32, #tpu.memory_space<vmem>>, vector<48x32xf32>,
    return
  }
  func.func @transform_0(%arg0: i32) -> (i32, i32, i32) {
    %c0_i32 = arith.constant 0 : i32
    %c0_i32_0 = arith.constant 0 : i32
    %c0_i32_1 = arith.constant 0 : i32
    return %arg0, %c0_i32, %c0_i32_0 : i32, i32, i32
  }
  func.func @transform_1(%arg0: i32) -> (i32, i32) {
    %c0_i32 = arith.constant 0 : i32
    %c0_i32_0 = arith.constant 0 : i32
    return %arg0, %c0_i32 : i32, i32
  }
  func.func @transform_2(%arg0: i32) -> (i32, i32) {
    %c0_i32 = arith.constant 0 : i32
    %c0_i32_0 = arith.constant 0 : i32
    %c0_i32_1 = arith.constant 0 : i32
    return %c0_i32, %c0_i32_0 : i32, i32
  }
  func.func @transform_3(%arg0: i32) -> (i32, i32) {
    %c0_i32 = arith.constant 0 : i32
    %c0_i32_0 = arith.constant 0 : i32
    return %arg0, %c0_i32 : i32, i32
  }
}

</mosaic_0001>

<llo_original>
// kernel: tpu_custom_call.1
$region0: #{tpu_custom_call.1}
  #allocation0 [shape = 'u32[]', space=smem, size = 0x4, offset = 0x4, fixed_abs, tag = 'smem constant byte address 0x4 - core index']
  #allocation1 [shape = 'u32[144,128]{1,0:T(1,128)}', space=vmem, size = 0x12000, scoped, tag = 'internal scratch']
  %s0 = inlined_call_operand.vmem [shape: bf16[1,48,48], index: 0, kind: input, shape index: {}]
  %s1 = inlined_call_operand.vmem [shape: f32[48,32], index: 1, kind: input, shape index: {}]
  %s2 = inlined_call_operand.vmem [shape: f32[32,34], index: 2, kind: input, shape index: {}]
  %s3 = inlined_call_operand.vmem [shape: f32[48,32], index: 3, kind: output, shape index: {}]
  %s4 = sld [smem:[#allocation0]]
  $region22: #{tpu_custom_call.1} parent=0
    _
  %s6 = ssub.s32 1, %s4
  %s7 = scalar_select 0, %s6, %s4
  // Predicated region
  $region2: #{tpu_custom_call.1} parent=0 // pred_check
    _
  $region3: #{tpu_custom_call.1} parent=0 // pred_check_branch
    %9 = sbr.rel (0) target = $region5
  $region4: #{tpu_custom_call.1} parent=0 // pred_region
    _
  $region5: #{tpu_custom_call.1} parent=0 // pred_fallthru
    _
  // Predicated region
  $region6: #{tpu_custom_call.1} parent=0 // pred_check
    _
  $region7: #{tpu_custom_call.1} parent=0 // pred_check_branch
    %11 = sbr.rel (0) target = $region9
  $region8: #{tpu_custom_call.1} parent=0 // pred_region
    _
  $region9: #{tpu_custom_call.1} parent=0 // pred_fallthru
    _
  // Predicated region
  $region10: #{tpu_custom_call.1} parent=0 // pred_check
    _
  $region11: #{tpu_custom_call.1} parent=0 // pred_check_branch
    %13 = sbr.rel (0) target = $region13
  $region12: #{tpu_custom_call.1} parent=0 // pred_region
    _
  $region13: #{tpu_custom_call.1} parent=0 // pred_fallthru
    _
  %v14 = vld [vmem:[%s1] sm:$0xff]
  %v15 = vld [vmem:[%s1 + $0x8] sm:$0xff]
  %v16 = vld [vmem:[%s1 + $0x10] sm:$0xff]
  %v17 = vld [vmem:[%s1 + $0x18] sm:$0xff]
  %v18 = vld [vmem:[%s1 + $0x20] sm:$0xff]
  %v19 = vld [vmem:[%s1 + $0x28] sm:$0xff]
  %v20 = vld [vmem:[%s2] sm:$0xff]
  %v21 = vld [vmem:[%s2 + $0x8] sm:$0xff]
  %v22 = vld [vmem:[%s2 + $0x10] sm:$0xff]
  %v23 = vld [vmem:[%s2 + $0x18] sm:$0xff]
  %vm24 = vcmask 261120
  %v26 = vsel %vm24, %v14, 0
  %v29 = vsel %vm24, %v15, 0
  %v32 = vsel %vm24, %v16, 0
  %v35 = vsel %vm24, %v17, 0
  %v38 = vsel %vm24, %v18, 0
  %v41 = vsel %vm24, %v19, 0
  %43 = vmatprep.subr.mxu0 0.0
  %44 = vmatpush1.msra.mxu0 0.0
  %45 = vmatprep.subr.mxu0 0.0
  %46 = vmatpush1.msra.mxu0 0.0
  %47 = vmatprep.subr.mxu0 0.0
  %48 = vmatpush1.msra.mxu0 0.0
  %49 = vmatprep.subr.mxu0 0.0
  %50 = vmatpush1.msra.mxu0 0.0
  %51 = vmatprep.subr.mxu0 0.0
  %52 = vmatpush1.msra.mxu0 0.0
  %53 = vmatprep.subr.mxu0 0.0
  %54 = vmatpush1.msra.mxu0 0.0
  %55 = vmatprep.subr.mxu0 0.0
  %56 = vmatpush1.msra.mxu0 0.0
  %57 = vmatprep.subr.mxu0 0.0
  %58 = vmatpush1.msra.mxu0 0.0
  %59 = vmatprep.subr.mxu0 0.0
  %60 = vmatpush1.msra.mxu0 0.0
  %61 = vmatprep.subr.mxu0 0.0
  %62 = vmatpush1.msra.mxu0 0.0
  %63 = vmatprep.subr.mxu0 0.0
  %64 = vmatpush1.msra.mxu0 0.0
  %65 = vmatprep.subr.mxu0 0.0
  %66 = vmatpush1.msra.mxu0 0.0
  %67 = vmatprep.subr.mxu0 0.0
  %68 = vmatpush1.msra.mxu0 %v23
  %69 = vmatprep.subr.mxu0 0.0
  %70 = vmatpush1.msra.mxu0 %v22
  %71 = vmatprep.subr.mxu0 0.0
  %72 = vmatpush1.msra.mxu0 %v21
  %73 = vmatprep.subr.mxu0 0.0
  %74 = vmatpush1.msra.mxu0 %v20
  %75 = vmatprep.subr.mxu0 0.0
  %76 = vmatpush2.msra.mxu0 0.0
  %77 = vmatprep.subr.mxu0 0.0
  %78 = vmatpush2.msra.mxu0 0.0
  %79 = vmatprep.subr.mxu0 0.0
  %80 = vmatpush2.msra.mxu0 0.0
  %81 = vmatprep.subr.mxu0 0.0
  %82 = vmatpush2.msra.mxu0 0.0
  %83 = vmatprep.subr.mxu0 0.0
  %84 = vmatpush2.msra.mxu0 0.0
  %85 = vmatprep.subr.mxu0 0.0
  %86 = vmatpush2.msra.mxu0 0.0
  %87 = vmatprep.subr.mxu0 0.0
  %88 = vmatpush2.msra.mxu0 0.0
  %89 = vmatprep.subr.mxu0 0.0
  %90 = vmatpush2.msra.mxu0 0.0
  %91 = vmatprep.subr.mxu0 0.0
  %92 = vmatpush2.msra.mxu0 0.0
  %93 = vmatprep.subr.mxu0 0.0
  %94 = vmatpush2.msra.mxu0 0.0
  %95 = vmatprep.subr.mxu0 0.0
  %96 = vmatpush2.msra.mxu0 0.0
  %97 = vmatprep.subr.mxu0 0.0
  %98 = vmatpush2.msra.mxu0 0.0
  %99 = vmatprep.subr.mxu0 0.0
  %100 = vmatpush2.msra.mxu0 0.0
  %101 = vmatprep.subr.mxu0 0.0
  %102 = vmatpush2.msra.mxu0 0.0
  %103 = vmatprep.subr.mxu0 0.0
  %104 = vmatpush2.msra.mxu0 0.0
  %105 = vmatprep.subr.mxu0 0.0
  %106 = vmatpush2.msra.mxu0 0.0
  %107 = vmatprep.mubr.f32.mxu0 0.0
  %108 = vmatmul.mubr.f32.gmra.mxu0 %v26
  %v109 = vpop.f32.mrf.mxu0
  %v110 = vadd.f32 0.0, %v109
  %v111 = vpop.f32.mrf.mxu0
  %112 = vmatprep.mubr.f32.mxu0 0.0
  %113 = vmatmul.mubr.f32.gmra.mxu0 %v29
  %v114 = vpop.f32.mrf.mxu0
  %v115 = vadd.f32 0.0, %v114
  %v116 = vpop.f32.mrf.mxu0
  %117 = vmatprep.mubr.f32.mxu0 0.0
  %118 = vmatmul.mubr.f32.gmra.mxu0 %v32
  %v119 = vpop.f32.mrf.mxu0
  %v120 = vadd.f32 0.0, %v119
  %v121 = vpop.f32.mrf.mxu0
  %122 = vmatprep.mubr.f32.mxu0 0.0
  %123 = vmatmul.mubr.f32.gmra.mxu0 %v35
  %v124 = vpop.f32.mrf.mxu0
  %v125 = vadd.f32 0.0, %v124
  %v126 = vpop.f32.mrf.mxu0
  %127 = vmatprep.mubr.f32.mxu0 0.0
  %128 = vmatmul.mubr.f32.gmra.mxu0 %v38
  %v129 = vpop.f32.mrf.mxu0
  %v130 = vadd.f32 0.0, %v129
  %v131 = vpop.f32.mrf.mxu0
  %132 = vmatprep.mubr.f32.mxu0 0.0
  %133 = vmatmul.mubr.f32.gmra.mxu0 %v41
  %v134 = vpop.f32.mrf.mxu0
  %v135 = vadd.f32 0.0, %v134
  %v136 = vpop.f32.mrf.mxu0
  %137 = vdwg.mxu0
  %v138 = vlaneseq
  %v139 = vand.u32 %v138, 127
  %vm140 = vcmp.eq.s32.totalorder %v139, 0
  %147 = vrot.lane.b32.xlu0 %v110, 96
  %v148 = vpop.permute.xlu0 %147
  %149 = vrot.lane.b32.xlu0 %v115, 96
  %v150 = vpop.permute.xlu0 %149
  %151 = vrot.lane.b32.xlu0 %v120, 96
  %v152 = vpop.permute.xlu0 %151
  %153 = vrot.lane.b32.xlu0 %v125, 96
  %v154 = vpop.permute.xlu0 %153
  %155 = vrot.lane.b32.xlu0 %v130, 96
  %v156 = vpop.permute.xlu0 %155
  %157 = vrot.lane.b32.xlu0 %v135, 96
  %v158 = vpop.permute.xlu0 %157
  %v165 = vsel %vm140, %v148, 1.0
  %v166 = vsel %vm140, %v150, 1.0
  %v167 = vsel %vm140, %v152, 1.0
  %v168 = vsel %vm140, %v154, 1.0
  %v169 = vsel %vm140, %v156, 1.0
  %v170 = vsel %vm140, %v158, 1.0
  %v171 = vsel %vm140, 1.0, %v148
  %v172 = vsel %vm140, 1.0, %v150
  %v173 = vsel %vm140, 1.0, %v152
  %v174 = vsel %vm140, 1.0, %v154
  %v175 = vsel %vm140, 1.0, %v156
  %v176 = vsel %vm140, 1.0, %v158
  %vm177 = vcmask 15360
  %v179 = vsel %vm177, %v165, 0
  %v182 = vsel %vm177, %v166, 0
  %v185 = vsel %vm177, %v167, 0
  %v188 = vsel %vm177, %v168, 0
  %v191 = vsel %vm177, %v169, 0
  %v194 = vsel %vm177, %v170, 0
  %v197 = vsel %vm177, %v171, 0
  %v200 = vsel %vm177, %v172, 0
  %v203 = vsel %vm177, %v173, 0
  %v206 = vsel %vm177, %v174, 0
  %v209 = vsel %vm177, %v175, 0
  %v212 = vsel %vm177, %v176, 0
  %214 = vmatprep.subr.mxu0 0.0
  %215 = vmatpush1.xpose.msra.mxu0 0.0
  %216 = vmatprep.subr.mxu0 0.0
  %217 = vmatpush1.xpose.msra.mxu0 0.0
  %218 = vmatprep.subr.mxu0 0.0
  %219 = vmatpush1.xpose.msra.mxu0 0.0
  %220 = vmatprep.subr.mxu0 0.0
  %221 = vmatpush1.xpose.msra.mxu0 0.0
  %222 = vmatprep.subr.mxu0 0.0
  %223 = vmatpush1.xpose.msra.mxu0 0.0
  %224 = vmatprep.subr.mxu0 0.0
  %225 = vmatpush1.xpose.msra.mxu0 0.0
  %226 = vmatprep.subr.mxu0 0.0
  %227 = vmatpush1.xpose.msra.mxu0 0.0
  %228 = vmatprep.subr.mxu0 0.0
  %229 = vmatpush1.xpose.msra.mxu0 0.0
  %230 = vmatprep.subr.mxu0 0.0
  %231 = vmatpush1.xpose.msra.mxu0 0.0
  %232 = vmatprep.subr.mxu0 0.0
  %233 = vmatpush1.xpose.msra.mxu0 0.0
  %234 = vmatprep.subr.mxu0 0.0
  %235 = vmatpush1.xpose.msra.mxu0 %v212
  %236 = vmatprep.subr.mxu0 0.0
  %237 = vmatpush1.xpose.msra.mxu0 %v209
  %238 = vmatprep.subr.mxu0 0.0
  %239 = vmatpush1.xpose.msra.mxu0 %v206
  %240 = vmatprep.subr.mxu0 0.0
  %241 = vmatpush1.xpose.msra.mxu0 %v203
  %242 = vmatprep.subr.mxu0 0.0
  %243 = vmatpush1.xpose.msra.mxu0 %v200
  %244 = vmatprep.subr.mxu0 0.0
  %245 = vmatpush1.xpose.msra.mxu0 %v197
  %246 = vmatprep.subr.mxu0 0.0
  %247 = vmatpush2.xpose.msra.mxu0 0.0
  %248 = vmatprep.subr.mxu0 0.0
  %249 = vmatpush2.xpose.msra.mxu0 0.0
  %250 = vmatprep.subr.mxu0 0.0
  %251 = vmatpush2.xpose.msra.mxu0 0.0
  %252 = vmatprep.subr.mxu0 0.0
  %253 = vmatpush2.xpose.msra.mxu0 0.0
  %254 = vmatprep.subr.mxu0 0.0
  %255 = vmatpush2.xpose.msra.mxu0 0.0
  %256 = vmatprep.subr.mxu0 0.0
  %257 = vmatpush2.xpose.msra.mxu0 0.0
  %258 = vmatprep.subr.mxu0 0.0
  %259 = vmatpush2.xpose.msra.mxu0 0.0
  %260 = vmatprep.subr.mxu0 0.0
  %261 = vmatpush2.xpose.msra.mxu0 0.0
  %262 = vmatprep.subr.mxu0 0.0
  %263 = vmatpush2.xpose.msra.mxu0 0.0
  %264 = vmatprep.subr.mxu0 0.0
  %265 = vmatpush2.xpose.msra.mxu0 0.0
  %266 = vmatprep.subr.mxu0 0.0
  %267 = vmatpush2.xpose.msra.mxu0 0.0
  %268 = vmatprep.subr.mxu0 0.0
  %269 = vmatpush2.xpose.msra.mxu0 0.0
  %270 = vmatprep.subr.mxu0 0.0
  %271 = vmatpush2.xpose.msra.mxu0 0.0
  %272 = vmatprep.subr.mxu0 0.0
  %273 = vmatpush2.xpose.msra.mxu0 0.0
  %274 = vmatprep.subr.mxu0 0.0
  %275 = vmatpush2.xpose.msra.mxu0 0.0
  %276 = vmatprep.subr.mxu0 0.0
  %277 = vmatpush2.xpose.msra.mxu0 0.0
  %278 = vmatprep.mubr.f32.mxu0 0.0
  %279 = vmatmul.mubr.f32.gmra.mxu0 %v179
  %v280 = vpop.f32.mrf.mxu0
  %v281 = vadd.f32 0.0, %v280
  %v282 = vpop.f32.mrf.mxu0
  %283 = vmatprep.mubr.f32.mxu0 0.0
  %284 = vmatmul.mubr.f32.gmra.mxu0 %v182
  %v285 = vpop.f32.mrf.mxu0
  %v286 = vadd.f32 0.0, %v285
  %v287 = vpop.f32.mrf.mxu0
  %288 = vmatprep.mubr.f32.mxu0 0.0
  %289 = vmatmul.mubr.f32.gmra.mxu0 %v185
  %v290 = vpop.f32.mrf.mxu0
  %v291 = vadd.f32 0.0, %v290
  %v292 = vpop.f32.mrf.mxu0
  %293 = vmatprep.mubr.f32.mxu0 0.0
  %294 = vmatmul.mubr.f32.gmra.mxu0 %v188
  %v295 = vpop.f32.mrf.mxu0
  %v296 = vadd.f32 0.0, %v295
  %v297 = vpop.f32.mrf.mxu0
  %298 = vmatprep.mubr.f32.mxu0 0.0
  %299 = vmatmul.mubr.f32.gmra.mxu0 %v191
  %v300 = vpop.f32.mrf.mxu0
  %v301 = vadd.f32 0.0, %v300
  %v302 = vpop.f32.mrf.mxu0
  %303 = vmatprep.mubr.f32.mxu0 0.0
  %304 = vmatmul.mubr.f32.gmra.mxu0 %v194
  %v305 = vpop.f32.mrf.mxu0
  %v306 = vadd.f32 0.0, %v305
  %v307 = vpop.f32.mrf.mxu0
  %308 = vdwg.mxu0
  %vm309 = vcmp.gt.f32.partialorder %v281, 0.0
  %vm310 = vcmp.gt.f32.partialorder %v286, 0.0
  %vm311 = vcmp.gt.f32.partialorder %v291, 0.0
  %vm312 = vcmp.gt.f32.partialorder %v296, 0.0
  %vm313 = vcmp.gt.f32.partialorder %v301, 0.0
  %vm314 = vcmp.gt.f32.partialorder %v306, 0.0
  %v315 = vmul.f32 %v281, 0.2
  %v316 = vmul.f32 %v286, 0.2
  %v317 = vmul.f32 %v291, 0.2
  %v318 = vmul.f32 %v296, 0.2
  %v319 = vmul.f32 %v301, 0.2
  %v320 = vmul.f32 %v306, 0.2
  %v321 = vsel %vm309, %v281, %v315
  %v322 = vsel %vm310, %v286, %v316
  %v323 = vsel %vm311, %v291, %v317
  %v324 = vsel %vm312, %v296, %v318
  %v325 = vsel %vm313, %v301, %v319
  %v326 = vsel %vm314, %v306, %v320
  %v327 = vld [vmem:[%s0] sm:$0xf]
  %v328 = vld [vmem:[%s0 + $0x4] sm:$0xf]
  %v329 = vld [vmem:[%s0 + $0x8] sm:$0xf]
  %v330 = vld [vmem:[%s0 + $0xc] sm:$0xf]
  %v331 = vld [vmem:[%s0 + $0x10] sm:$0xf]
  %v332 = vld [vmem:[%s0 + $0x14] sm:$0xf]
  %v333 = vunpack.c.l.bf16 %v327
  %v334 = vunpack.c.l.bf16 %v328
  %v335 = vunpack.c.l.bf16 %v329
  %v336 = vunpack.c.l.bf16 %v330
  %v337 = vunpack.c.l.bf16 %v331
  %v338 = vunpack.c.l.bf16 %v332
  %v339 = vadd.f32 %v321, %v333
  %v340 = vadd.f32 %v322, %v334
  %v341 = vadd.f32 %v323, %v335
  %v342 = vadd.f32 %v324, %v336
  %v343 = vadd.f32 %v325, %v337
  %v344 = vadd.f32 %v326, %v338
  %vm345 = vcmask 392192
  %v346 = vsel %vm345, %v339, -inf
  %347 = vmax.xlane.f32.xlu0 %v346
  %v348 = vpop.xlane.xlu0 %347
  %v349 = vsel %vm345, %v340, -inf
  %350 = vmax.xlane.f32.xlu0 %v349
  %v351 = vpop.xlane.xlu0 %350
  %v352 = vsel %vm345, %v341, -inf
  %353 = vmax.xlane.f32.xlu0 %v352
  %v354 = vpop.xlane.xlu0 %353
  %v355 = vsel %vm345, %v342, -inf
  %356 = vmax.xlane.f32.xlu0 %v355
  %v357 = vpop.xlane.xlu0 %356
  %v358 = vsel %vm345, %v343, -inf
  %359 = vmax.xlane.f32.xlu0 %v358
  %v360 = vpop.xlane.xlu0 %359
  %v361 = vsel %vm345, %v344, -inf
  %362 = vmax.xlane.f32.xlu0 %v361
  %v363 = vpop.xlane.xlu0 %362
  %v364 = vsub.f32 %v339, %v348
  %v365 = vsub.f32 %v340, %v351
  %v366 = vsub.f32 %v341, %v354
  %v367 = vsub.f32 %v342, %v357
  %v368 = vsub.f32 %v343, %v360
  %v369 = vsub.f32 %v344, %v363
  %v370 = vmul.f32 %v364, 1.442695
  %v371 = vpow.pop %v370
  %v372 = vmul.f32 %v365, 1.442695
  %v373 = vpow.pop %v372
  %v374 = vmul.f32 %v366, 1.442695
  %v375 = vpow.pop %v374
  %v376 = vmul.f32 %v367, 1.442695
  %v377 = vpow.pop %v376
  %v378 = vmul.f32 %v368, 1.442695
  %v379 = vpow.pop %v378
  %v380 = vmul.f32 %v369, 1.442695
  %v381 = vpow.pop %v380
  %v382 = vsel %vm345, %v371, 0.0
  %383 = vadd.xlane.f32.xlu0 %v382
  %v384 = vpop.xlane.xlu0 %383
  %v385 = vsel %vm345, %v373, 0.0
  %386 = vadd.xlane.f32.xlu0 %v385
  %v387 = vpop.xlane.xlu0 %386
  %v388 = vsel %vm345, %v375, 0.0
  %389 = vadd.xlane.f32.xlu0 %v388
  %v390 = vpop.xlane.xlu0 %389
  %v391 = vsel %vm345, %v377, 0.0
  %392 = vadd.xlane.f32.xlu0 %v391
  %v393 = vpop.xlane.xlu0 %392
  %v394 = vsel %vm345, %v379, 0.0
  %395 = vadd.xlane.f32.xlu0 %v394
  %v396 = vpop.xlane.xlu0 %395
  %v397 = vsel %vm345, %v381, 0.0
  %398 = vadd.xlane.f32.xlu0 %v397
  %v399 = vpop.xlane.xlu0 %398
  %v400 = vrcp.pop %v384
  %v401 = vrcp.pop %v387
  %v402 = vrcp.pop %v390
  %v403 = vrcp.pop %v393
  %v404 = vrcp.pop %v396
  %v405 = vrcp.pop %v399
  %v407 = vsel %vm345, %v371, 0
  %v410 = vsel %vm345, %v373, 0
  %v413 = vsel %vm345, %v375, 0
  %v416 = vsel %vm345, %v377, 0
  %v419 = vsel %vm345, %v379, 0
  %v422 = vsel %vm345, %v381, 0
  %424 = vmatprep.subr.mxu0 0.0
  %425 = vmatpush1.msra.mxu0 0.0
  %426 = vmatprep.subr.mxu0 0.0
  %427 = vmatpush1.msra.mxu0 0.0
  %428 = vmatprep.subr.mxu0 0.0
  %429 = vmatpush1.msra.mxu0 0.0
  %430 = vmatprep.subr.mxu0 0.0
  %431 = vmatpush1.msra.mxu0 0.0
  %432 = vmatprep.subr.mxu0 0.0
  %433 = vmatpush1.msra.mxu0 0.0
  %434 = vmatprep.subr.mxu0 0.0
  %435 = vmatpush1.msra.mxu0 0.0
  %436 = vmatprep.subr.mxu0 0.0
  %437 = vmatpush1.msra.mxu0 0.0
  %438 = vmatprep.subr.mxu0 0.0
  %439 = vmatpush1.msra.mxu0 0.0
  %440 = vmatprep.subr.mxu0 0.0
  %441 = vmatpush1.msra.mxu0 0.0
  %442 = vmatprep.subr.mxu0 0.0
  %443 = vmatpush1.msra.mxu0 0.0
  %444 = vmatprep.subr.mxu0 0.0
  %445 = vmatpush1.msra.mxu0 %v135
  %446 = vmatprep.subr.mxu0 0.0
  %447 = vmatpush1.msra.mxu0 %v130
  %448 = vmatprep.subr.mxu0 0.0
  %449 = vmatpush1.msra.mxu0 %v125
  %450 = vmatprep.subr.mxu0 0.0
  %451 = vmatpush1.msra.mxu0 %v120
  %452 = vmatprep.subr.mxu0 0.0
  %453 = vmatpush1.msra.mxu0 %v115
  %454 = vmatprep.subr.mxu0 0.0
  %455 = vmatpush1.msra.mxu0 %v110
  %456 = vmatprep.subr.mxu0 0.0
  %457 = vmatpush2.msra.mxu0 0.0
  %458 = vmatprep.subr.mxu0 0.0
  %459 = vmatpush2.msra.mxu0 0.0
  %460 = vmatprep.subr.mxu0 0.0
  %461 = vmatpush2.msra.mxu0 0.0
  %462 = vmatprep.subr.mxu0 0.0
  %463 = vmatpush2.msra.mxu0 0.0
  %464 = vmatprep.subr.mxu0 0.0
  %465 = vmatpush2.msra.mxu0 0.0
  %466 = vmatprep.subr.mxu0 0.0
  %467 = vmatpush2.msra.mxu0 0.0
  %468 = vmatprep.subr.mxu0 0.0
  %469 = vmatpush2.msra.mxu0 0.0
  %470 = vmatprep.subr.mxu0 0.0
  %471 = vmatpush2.msra.mxu0 0.0
  %472 = vmatprep.subr.mxu0 0.0
  %473 = vmatpush2.msra.mxu0 0.0
  %474 = vmatprep.subr.mxu0 0.0
  %475 = vmatpush2.msra.mxu0 0.0
  %476 = vmatprep.subr.mxu0 0.0
  %477 = vmatpush2.msra.mxu0 0.0
  %478 = vmatprep.subr.mxu0 0.0
  %479 = vmatpush2.msra.mxu0 0.0
  %480 = vmatprep.subr.mxu0 0.0
  %481 = vmatpush2.msra.mxu0 0.0
  %482 = vmatprep.subr.mxu0 0.0
  %483 = vmatpush2.msra.mxu0 0.0
  %484 = vmatprep.subr.mxu0 0.0
  %485 = vmatpush2.msra.mxu0 0.0
  %486 = vmatprep.subr.mxu0 0.0
  %487 = vmatpush2.msra.mxu0 0.0
  %488 = vmatprep.mubr.f32.mxu0 0.0
  %489 = vmatmul.mubr.f32.gmra.mxu0 %v407
  %v490 = vpop.f32.mrf.mxu0
  %v491 = vadd.f32 0.0, %v490
  %v492 = vpop.f32.mrf.mxu0
  %493 = vmatprep.mubr.f32.mxu0 0.0
  %494 = vmatmul.mubr.f32.gmra.mxu0 %v410
  %v495 = vpop.f32.mrf.mxu0
  %v496 = vadd.f32 0.0, %v495
  %v497 = vpop.f32.mrf.mxu0
  %498 = vmatprep.mubr.f32.mxu0 0.0
  %499 = vmatmul.mubr.f32.gmra.mxu0 %v413
  %v500 = vpop.f32.mrf.mxu0
  %v501 = vadd.f32 0.0, %v500
  %v502 = vpop.f32.mrf.mxu0
  %503 = vmatprep.mubr.f32.mxu0 0.0
  %504 = vmatmul.mubr.f32.gmra.mxu0 %v416
  %v505 = vpop.f32.mrf.mxu0
  %v506 = vadd.f32 0.0, %v505
  %v507 = vpop.f32.mrf.mxu0
  %508 = vmatprep.mubr.f32.mxu0 0.0
  %509 = vmatmul.mubr.f32.gmra.mxu0 %v419
  %v510 = vpop.f32.mrf.mxu0
  %v511 = vadd.f32 0.0, %v510
  %v512 = vpop.f32.mrf.mxu0
  %513 = vmatprep.mubr.f32.mxu0 0.0
  %514 = vmatmul.mubr.f32.gmra.mxu0 %v422
  %v515 = vpop.f32.mrf.mxu0
  %v516 = vadd.f32 0.0, %v515
  %v517 = vpop.f32.mrf.mxu0
  %518 = vdwg.mxu0
  %v519 = vmul.f32 %v491, %v400
  %v520 = vmul.f32 %v496, %v401
  %v521 = vmul.f32 %v501, %v402
  %v522 = vmul.f32 %v506, %v403
  %v523 = vmul.f32 %v511, %v404
  %v524 = vmul.f32 %v516, %v405
  %v525 = vadd.f32 %v519, %v14
  %v526 = vadd.f32 %v520, %v15
  %v527 = vadd.f32 %v521, %v16
  %v528 = vadd.f32 %v522, %v17
  %v529 = vadd.f32 %v523, %v18
  %v530 = vadd.f32 %v524, %v19
  %531 = vst.msk [vmem:[%s3] sm:$0xff] %vm24, %v525
  %532 = vst.msk [vmem:[%s3 + $0x8] sm:$0xff] %vm24, %v526
  %533 = vst.msk [vmem:[%s3 + $0x10] sm:$0xff] %vm24, %v527
  %534 = vst.msk [vmem:[%s3 + $0x18] sm:$0xff] %vm24, %v528
  %535 = vst.msk [vmem:[%s3 + $0x20] sm:$0xff] %vm24, %v529
  %536 = vst.msk [vmem:[%s3 + $0x28] sm:$0xff] %vm24, %v530
  // Predicated region
  $region14: #{tpu_custom_call.1} parent=0 // pred_check
    _
  $region15: #{tpu_custom_call.1} parent=0 // pred_check_branch
    %538 = sbr.rel (0) target = $region17
  $region16: #{tpu_custom_call.1} parent=0 // pred_region
    _
  $region17: #{tpu_custom_call.1} parent=0 // pred_fallthru
    _
  // Predicated region
  $region18: #{tpu_custom_call.1} parent=0 // pred_check
    _
  $region19: #{tpu_custom_call.1} parent=0 // pred_check_branch
    %540 = sbr.rel (0) target = $region21
  $region20: #{tpu_custom_call.1} parent=0 // pred_region
    _
  $region21: #{tpu_custom_call.1} parent=0 // pred_fallthru
    _

</llo_original>
